<compile_context>
chip_gen: v5e
topology: v5e:2x2
jax: 0.10.0
libtpu: 0.0.40
codegen_flags: <defaults>
</compile_context>

<pallas_src>
from functools import partial

import numpy as np
import jax
import jax.numpy as jnp
from jax.experimental import pallas as pl
from jax.experimental.pallas import tpu as pltpu


def _rocstar_kernel(logits_ref, target_ref, hpred_ref, htrue_ref, gamma_ref,
                    loss_ref, hpred_out_ref, htrue_out_ref, *, sample_size):
    B, C = logits_ref.shape
    S_full = hpred_ref.shape[0]
    S = min(sample_size, S_full)                     # static Python int

    gamma = gamma_ref[0]                             # scalar from SMEM

    # ---- p1 = softmax(logits, axis=1)[:, 1], column layout (B, 1) ----------
    lt = logits_ref[...].astype(jnp.float32)                     # (B, C)
    if C == 2:
        # softmax[:, 1] == sigmoid(z1 - z0): one EUP exp + one approx vrcp.
        z = lt[:, 1:2] - lt[:, 0:1]                              # (B, 1)
        p1 = pl.reciprocal(1.0 + jnp.exp(-z), approx=True)
    else:
        m = jnp.max(lt, axis=1, keepdims=True)                   # (B, 1)
        e = jnp.exp(lt - m)                                      # (B, C)
        p1 = e[:, 1:2] * pl.reciprocal(jnp.sum(e, axis=1, keepdims=True),
                                       approx=True)              # (B, 1)

    # ---- indicators (mask-weighted sums replace the boolean gathers) -------
    y = target_ref[...]                                          # (B, 1)
    pos = (y > 0.0).astype(jnp.float32)
    neg = (y < 1.0).astype(jnp.float32)

    hp_all = hpred_ref[...]                                      # (S_full, 1)
    ht_all = htrue_ref[...]                                      # (S_full, 1)
    # "last sample_size" window as an iota mask folded into the indicators
    # (no slice -> no relayout of the history load).
    row = jax.lax.broadcasted_iota(jnp.int32, (S_full, 1), 0)
    win = row >= (S_full - S)
    hpos = (win & (ht_all > 0.0)).astype(jnp.float32)
    hneg = (win & (ht_all < 1.0)).astype(jnp.float32)

    # ---- centered operands: (a - b)^2 is invariant to a common shift, and
    #      centering by 0.5 keeps the f32 moment expansion well conditioned --
    pc = p1 - 0.5                       # batch positives operand
    pg = p1 + gamma - 0.5               # batch negatives operand (+gamma)
    hc = hp_all - 0.5                   # history positives operand
    hg = hp_all + gamma - 0.5           # history negatives operand (+gamma)

    # ---- all 12 moment sums in 2 wide sublane reductions --------------------
    def stacked_moments(w_a, base_a, w_b, base_b, n):
        # (1, 6) = [sum w_a, sum w_a*base_a, sum w_a*base_a^2,
        #           sum w_b, sum w_b*base_b, sum w_b*base_b^2]
        col = jax.lax.broadcasted_iota(jnp.int32, (n, 6), 1)
        first = col < 3
        w = jnp.where(first, w_a, w_b)                           # (n, 6)
        base = jnp.where(first, base_a, base_b)                  # (n, 6)
        k = jnp.where(first, col, col - 3)                       # 0,1,2,0,1,2
        powv = jnp.where(k == 0, jnp.ones_like(base),
                         jnp.where(k == 1, base, base * base))
        return jnp.sum(w * powv, axis=0, keepdims=True)          # (1, 6)

    bsum = stacked_moments(pos, pc, neg, pg, B)          # batch-side moments
    hsum = stacked_moments(hneg, hg, hpos, hc, S_full)   # history-side moments

    n_pos, swb, swb2 = bsum[:, 0:1], bsum[:, 1:2], bsum[:, 2:3]
    n_neg, swa, swa2 = bsum[:, 3:4], bsum[:, 4:5], bsum[:, 5:6]
    n_hneg, sva, sva2 = hsum[:, 0:1], hsum[:, 1:2], hsum[:, 2:3]
    n_hpos, svb, svb2 = hsum[:, 3:4], hsum[:, 4:5], hsum[:, 5:6]

    # loss_positive: mean_{i in pos, j in hist-neg} (hp_j + gamma - p1_i)^2
    #   sum_ij w_i v_j (a_j - b_i)^2 = (Sw)(Sv a^2) - 2(Sw b)(Sv a) + (Sv)(Sw b^2)
    sum_p = n_pos * sva2 - 2.0 * swb * sva + n_hneg * swb2
    cnt_p = n_pos * n_hneg
    loss_p = jnp.where((n_pos > 0.0) & (n_hneg > 0.0),
                       sum_p / jnp.maximum(cnt_p, 1.0), 0.0)

    # loss_negative: mean_{i in neg, k in hist-pos} (p1_i + gamma - hp_k)^2
    sum_n = n_neg * svb2 - 2.0 * swa * svb + n_hpos * swa2
    cnt_n = n_neg * n_hpos
    loss_n = jnp.where((n_neg > 0.0) & (n_hpos > 0.0),
                       sum_n / jnp.maximum(cnt_n, 1.0), 0.0)

    loss_ref[...] = loss_p + loss_n                              # (1, 1)

    # ---- in-place history roll: new = concat(old[B:], p1) -------------------
    # hp_all / ht_all were fully loaded above, so these writes into the
    # HBM-aliased outputs are read-before-write safe.
    keep = S_full - B                                            # static
    if keep > 0:
        hpred_out_ref[:keep, :] = hp_all[B:, :]
        htrue_out_ref[:keep, :] = ht_all[B:, :]
    hpred_out_ref[keep:, :] = p1
    htrue_out_ref[keep:, :] = p1      # replicates the original code's quirk on purpose


@partial(jax.jit, static_argnames=("sample_size",), donate_argnums=(2, 3))
def rocstar_step(y_pred, target, pred_hist, true_hist, gamma, *, sample_size):
    """One training-step forward: (loss_scalar, new_pred_hist, new_true_hist)."""
    B, _C = y_pred.shape
    S_full = pred_hist.shape[0]
    kernel = partial(_rocstar_kernel, sample_size=sample_size)
    loss, new_pred, new_true = pl.pallas_call(
        kernel,
        out_shape=(
            jax.ShapeDtypeStruct((1, 1), jnp.float32),          # loss
            jax.ShapeDtypeStruct((S_full, 1), jnp.float32),     # new pred history
            jax.ShapeDtypeStruct((S_full, 1), jnp.float32),     # new "true" history
        ),
        in_specs=[
            pl.BlockSpec(memory_space=pltpu.MemorySpace.VMEM),  # logits (B, C)
            pl.BlockSpec(memory_space=pltpu.MemorySpace.VMEM),  # target (B, 1)
            pl.BlockSpec(memory_space=pltpu.MemorySpace.VMEM),  # pred history
            pl.BlockSpec(memory_space=pltpu.MemorySpace.VMEM),  # "true" history
            pl.BlockSpec(memory_space=pltpu.MemorySpace.SMEM),  # gamma (1,)
        ],
        out_specs=(
            pl.BlockSpec(memory_space=pltpu.MemorySpace.VMEM),
            pl.BlockSpec(memory_space=pltpu.MemorySpace.VMEM),
            pl.BlockSpec(memory_space=pltpu.MemorySpace.VMEM),
        ),
        input_output_aliases={2: 1, 3: 2},
    )(y_pred.astype(jnp.float32),
      target.astype(jnp.float32).reshape(B, 1),
      pred_hist, true_hist, gamma)
    return loss[0, 0], new_pred, new_true


class RocStarLoss:
    """JAX/Pallas port of the PyTorch RocStarLoss module (forward pass)."""

    def __init__(self, delta=1.0, sample_size=16, sample_size_gamma=16,
                 update_gamma_each=100, seed=42):
        self.delta = delta
        self.sample_size = sample_size
        self.sample_size_gamma = sample_size_gamma
        self.update_gamma_each = update_gamma_each
        self.steps = 0
        size = max(sample_size, sample_size_gamma)
        # Deterministic synthetic init (torch.rand / torch.randint equivalents),
        # stored column-oriented as (size, 1) like the PyTorch module.
        k1, k2 = jax.random.split(jax.random.PRNGKey(seed))
        self.y_pred_history = jax.random.uniform(k1, (size, 1), dtype=jnp.float32)
        self.y_true_history = jax.random.randint(k2, (size, 1), 0, 2).astype(jnp.float32)
        self.gamma = 0.0
        self._gamma_dev = jnp.zeros((1,), jnp.float32)   # device-cached gamma

    def update_gamma(self):
        # TODO(synk): masked gather + sort / percentile selection stays host-side
        # NumPy (runs once every `update_gamma_each` steps, off the hot path).
        yp = np.asarray(self.y_pred_history)[-self.sample_size_gamma:, 0]
        yt = np.asarray(self.y_true_history)[-self.sample_size_gamma:, 0]
        positive = yp[yt > 0]
        negative = yp[yt < 1]
        diff = positive.reshape(-1, 1) - negative.reshape(1, -1)
        new_gamma = 0.0
        if diff.size > 0:
            auc = (diff > 0).astype(np.float32).mean()
            num_wrong_ordered = (1.0 - auc) * diff.size
            correct_ordered = np.sort(diff[diff > 0].reshape(-1))
            if correct_ordered.size > 0:
                idx = min(int(num_wrong_ordered * self.delta), correct_ordered.size - 1)
                new_gamma = float(correct_ordered[idx])
        if new_gamma != self.gamma:
            # Only re-upload the scalar when it actually changes.
            self._gamma_dev = jnp.full((1,), new_gamma, dtype=jnp.float32)
        self.gamma = new_gamma

    def __call__(self, y_pred, target):
        """
        Args:
            y_pred: (B, C) logits, float32 (softmax over axis 1, class 1 taken).
            target: (B,) labels in {0, 1}.
        Returns:
            scalar loss (jnp.float32, still on device).
        """
        if self.steps % self.update_gamma_each == 0:
            self.update_gamma()
        self.steps += 1

        B = y_pred.shape[0]
        assert B <= self.y_pred_history.shape[0], "batch larger than history window"

        loss, self.y_pred_history, self.y_true_history = rocstar_step(
            jnp.asarray(y_pred, jnp.float32),
            jnp.asarray(target, jnp.float32),
            self.y_pred_history, self.y_true_history, self._gamma_dev,
            sample_size=self.sample_size)
        return loss


def _reference_loss(y_pred, target, pred_hist, true_hist, gamma, sample_size):
    """NumPy reference replicating the PyTorch forward (with the NaN guard)."""
    y_pred = np.asarray(y_pred, np.float64)
    z = y_pred - y_pred.max(axis=1, keepdims=True)
    e = np.exp(z)
    p1 = (e[:, 1] / e.sum(axis=1)).reshape(-1, 1)
    y = np.asarray(target, np.float64).reshape(-1, 1)
    hp = np.asarray(pred_hist, np.float64).reshape(-1)[-sample_size:]
    ht = np.asarray(true_hist, np.float64).reshape(-1)[-sample_size:]
    positive = p1[y > 0]
    negative = p1[y < 1]
    pos_h = hp[ht > 0]
    neg_h = hp[ht < 1]
    loss_pos = 0.0
    if positive.size > 0 and neg_h.size > 0:
        d = neg_h.reshape(1, -1) + gamma - positive.reshape(-1, 1)
        loss_pos = float(np.mean(np.maximum(d ** 2, 0.0)))
    loss_neg = 0.0
    if negative.size > 0 and pos_h.size > 0:
        d = negative.reshape(1, -1) + gamma - pos_h.reshape(-1, 1)
        loss_neg = float(np.mean(np.maximum(d ** 2, 0.0)))
    return loss_pos + loss_neg


if __name__ == "__main__":
    loss_mod = RocStarLoss(delta=1.0, sample_size=16, sample_size_gamma=16,
                           update_gamma_each=100, seed=42)

    key = jax.random.PRNGKey(0)
    B, C = 8, 2
    for _ in range(3):
        key, k1, k2 = jax.random.split(key, 3)
        y_pred = jax.random.normal(k1, (B, C), dtype=jnp.float32)
        target = (jax.random.uniform(k2, (B,)) > 0.5).astype(jnp.float32)

        # Host copies taken before the call (the device buffers are donated).
        hist_p = np.asarray(loss_mod.y_pred_history).copy()
        hist_t = np.asarray(loss_mod.y_true_history).copy()

        loss = loss_mod(y_pred, target)
        loss = jax.block_until_ready(loss)

        ref = _reference_loss(np.asarray(y_pred), np.asarray(target),
                              hist_p, hist_t, loss_mod.gamma, loss_mod.sample_size)
        np.testing.assert_allclose(float(loss), ref, rtol=2e-2, atol=2e-3)

    print("KERNEL_OK")
</pallas_src>

<mosaic_0001>
module attributes {stable_mosaic.version = 11 : i64} {
  func.func @_rocstar_kernel(%arg0: memref<8x2xf32, #tpu.memory_space<vmem>>, %arg1: memref<8x1xf32, #tpu.memory_space<vmem>>, %arg2: memref<16x1xf32, #tpu.memory_space<vmem>>, %arg3: memref<16x1xf32, #tpu.memory_space<vmem>>, %arg4: memref<1xf32, #tpu.memory_space<smem>>, %arg5: memref<1x1xf32, #tpu.memory_space<vmem>>, %arg6: memref<16x1xf32, #tpu.memory_space<vmem>>, %arg7: memref<16x1xf32, #tpu.memory_space<vmem>>) attributes {dimension_semantics = [], scalar_prefetch = 0 : i64, scratch_operands = 0 : i64, tpu.core_type = #tpu.core_type<tc>} {
    %c0 = arith.constant 0 : index
    %0 = memref.load %arg4[%c0] : memref<1xf32, #tpu.memory_space<smem>>
    %c0_0 = arith.constant 0 : index
    %c0_1 = arith.constant 0 : index
    %1 = vector.load %arg0[%c0_0, %c0_1] : memref<8x2xf32, #tpu.memory_space<vmem>>, vector<8x2xf32>
    %2 = vector.extract_strided_slice %1 {offsets = [0, 1], sizes = [8, 1], strides = [1, 1]} : vector<8x2xf32> to vector<8x1xf32>
    %3 = vector.extract_strided_slice %1 {offsets = [0, 0], sizes = [8, 1], strides = [1, 1]} : vector<8x2xf32> to vector<8x1xf32>
    %4 = arith.subf %2, %3 : vector<8x1xf32>
    %cst = arith.constant 0.000000e+00 : f32
    %5 = vector.broadcast %cst : f32 to vector<8x1xf32>
    %6 = arith.subf %5, %4 : vector<8x1xf32>
    %7 = math.exp %6 : vector<8x1xf32>
    %cst_2 = arith.constant 1.000000e+00 : f32
    %8 = vector.broadcast %cst_2 : f32 to vector<8x1xf32>
    %9 = arith.addf %8, %7 : vector<8x1xf32>
    %10 = tpu.reciprocal %9 {approx = true} : vector<8x1xf32> -> vector<8x1xf32>
    %c0_3 = arith.constant 0 : index
    %c0_4 = arith.constant 0 : index
    %11 = vector.load %arg1[%c0_3, %c0_4] : memref<8x1xf32, #tpu.memory_space<vmem>>, vector<8x1xf32>
    %cst_5 = arith.constant 0.000000e+00 : f32
    %12 = vector.broadcast %cst_5 : f32 to vector<8x1xf32>
    %13 = arith.cmpf ogt, %11, %12 : vector<8x1xf32>
    %14 = arith.extui %13 : vector<8x1xi1> to vector<8x1xi32>
    %15 = arith.sitofp %14 : vector<8x1xi32> to vector<8x1xf32>
    %cst_6 = arith.constant 1.000000e+00 : f32
    %16 = vector.broadcast %cst_6 : f32 to vector<8x1xf32>
    %17 = arith.cmpf olt, %11, %16 : vector<8x1xf32>
    %18 = arith.extui %17 : vector<8x1xi1> to vector<8x1xi32>
    %19 = arith.sitofp %18 : vector<8x1xi32> to vector<8x1xf32>
    %c0_7 = arith.constant 0 : index
    %c0_8 = arith.constant 0 : index
    %20 = vector.load %arg2[%c0_7, %c0_8] : memref<16x1xf32, #tpu.memory_space<vmem>>, vector<16x1xf32>
    %c0_9 = arith.constant 0 : index
    %c0_10 = arith.constant 0 : index
    %21 = vector.load %arg3[%c0_9, %c0_10] : memref<16x1xf32, #tpu.memory_space<vmem>>, vector<16x1xf32>
    %22 = tpu.iota {dimensions = array<i32: 0>} : vector<16x1xi32>
    %c0_i32 = arith.constant 0 : i32
    %23 = vector.broadcast %c0_i32 : i32 to vector<16x1xi32>
    %24 = arith.cmpi sge, %22, %23 : vector<16x1xi32>
    %cst_11 = arith.constant 0.000000e+00 : f32
    %25 = vector.broadcast %cst_11 : f32 to vector<16x1xf32>
    %26 = arith.cmpf ogt, %21, %25 : vector<16x1xf32>
    %27 = arith.andi %24, %26 : vector<16x1xi1>
    %28 = arith.extui %27 : vector<16x1xi1> to vector<16x1xi32>
    %29 = arith.sitofp %28 : vector<16x1xi32> to vector<16x1xf32>
    %cst_12 = arith.constant 1.000000e+00 : f32
    %30 = vector.broadcast %cst_12 : f32 to vector<16x1xf32>
    %31 = arith.cmpf olt, %21, %30 : vector<16x1xf32>
    %32 = arith.andi %24, %31 : vector<16x1xi1>
    %33 = arith.extui %32 : vector<16x1xi1> to vector<16x1xi32>
    %34 = arith.sitofp %33 : vector<16x1xi32> to vector<16x1xf32>
    %cst_13 = arith.constant 5.000000e-01 : f32
    %35 = vector.broadcast %cst_13 : f32 to vector<8x1xf32>
    %36 = arith.subf %10, %35 : vector<8x1xf32>
    %37 = vector.broadcast %0 : f32 to vector<8x1xf32>
    %38 = arith.addf %10, %37 : vector<8x1xf32>
    %cst_14 = arith.constant 5.000000e-01 : f32
    %39 = vector.broadcast %cst_14 : f32 to vector<8x1xf32>
    %40 = arith.subf %38, %39 : vector<8x1xf32>
    %cst_15 = arith.constant 5.000000e-01 : f32
    %41 = vector.broadcast %cst_15 : f32 to vector<16x1xf32>
    %42 = arith.subf %20, %41 : vector<16x1xf32>
    %43 = vector.broadcast %0 : f32 to vector<16x1xf32>
    %44 = arith.addf %20, %43 : vector<16x1xf32>
    %cst_16 = arith.constant 5.000000e-01 : f32
    %45 = vector.broadcast %cst_16 : f32 to vector<16x1xf32>
    %46 = arith.subf %44, %45 : vector<16x1xf32>
    %47 = tpu.iota {dimensions = array<i32: 1>} : vector<8x6xi32>
    %c3_i32 = arith.constant 3 : i32
    %48 = vector.broadcast %c3_i32 : i32 to vector<8x6xi32>
    %49 = arith.cmpi slt, %47, %48 : vector<8x6xi32>
    %50 = vector.shape_cast %15 : vector<8x1xf32> to vector<8x1xf32>
    %51 = vector.broadcast %50 : vector<8x1xf32> to vector<8x6xf32>
    %52 = vector.shape_cast %19 : vector<8x1xf32> to vector<8x1xf32>
    %53 = vector.broadcast %52 : vector<8x1xf32> to vector<8x6xf32>
    %54 = arith.select %49, %51, %53 : vector<8x6xi1>, vector<8x6xf32>
    %55 = vector.shape_cast %36 : vector<8x1xf32> to vector<8x1xf32>
    %56 = vector.broadcast %55 : vector<8x1xf32> to vector<8x6xf32>
    %57 = vector.shape_cast %40 : vector<8x1xf32> to vector<8x1xf32>
    %58 = vector.broadcast %57 : vector<8x1xf32> to vector<8x6xf32>
    %59 = arith.select %49, %56, %58 : vector<8x6xi1>, vector<8x6xf32>
    %c3_i32_17 = arith.constant 3 : i32
    %60 = vector.broadcast %c3_i32_17 : i32 to vector<8x6xi32>
    %61 = arith.subi %47, %60 : vector<8x6xi32>
    %62 = arith.select %49, %47, %61 : vector<8x6xi1>, vector<8x6xi32>
    %c0_i32_18 = arith.constant 0 : i32
    %63 = vector.broadcast %c0_i32_18 : i32 to vector<8x6xi32>
    %64 = arith.cmpi eq, %62, %63 : vector<8x6xi32>
    %cst_19 = arith.constant 1.000000e+00 : f32
    %65 = vector.broadcast %cst_19 : f32 to vector<8x6xf32>
    %c1_i32 = arith.constant 1 : i32
    %66 = vector.broadcast %c1_i32 : i32 to vector<8x6xi32>
    %67 = arith.cmpi eq, %62, %66 : vector<8x6xi32>
    %68 = arith.mulf %59, %59 : vector<8x6xf32>
    %69 = arith.select %67, %59, %68 : vector<8x6xi1>, vector<8x6xf32>
    %70 = arith.select %64, %65, %69 : vector<8x6xi1>, vector<8x6xf32>
    %71 = arith.mulf %54, %70 : vector<8x6xf32>
    %cst_20 = arith.constant dense<0.000000e+00> : vector<6xf32>
    %72 = vector.multi_reduction <add>, %71, %cst_20 [0] : vector<8x6xf32> to vector<6xf32>
    %73 = vector.shape_cast %72 : vector<6xf32> to vector<1x6xf32>
    %74 = tpu.iota {dimensions = array<i32: 1>} : vector<16x6xi32>
    %c3_i32_21 = arith.constant 3 : i32
    %75 = vector.broadcast %c3_i32_21 : i32 to vector<16x6xi32>
    %76 = arith.cmpi slt, %74, %75 : vector<16x6xi32>
    %77 = vector.shape_cast %34 : vector<16x1xf32> to vector<16x1xf32>
    %78 = vector.broadcast %77 : vector<16x1xf32> to vector<16x6xf32>
    %79 = vector.shape_cast %29 : vector<16x1xf32> to vector<16x1xf32>
    %80 = vector.broadcast %79 : vector<16x1xf32> to vector<16x6xf32>
    %81 = arith.select %76, %78, %80 : vector<16x6xi1>, vector<16x6xf32>
    %82 = vector.shape_cast %46 : vector<16x1xf32> to vector<16x1xf32>
    %83 = vector.broadcast %82 : vector<16x1xf32> to vector<16x6xf32>
    %84 = vector.shape_cast %42 : vector<16x1xf32> to vector<16x1xf32>
    %85 = vector.broadcast %84 : vector<16x1xf32> to vector<16x6xf32>
    %86 = arith.select %76, %83, %85 : vector<16x6xi1>, vector<16x6xf32>
    %c3_i32_22 = arith.constant 3 : i32
    %87 = vector.broadcast %c3_i32_22 : i32 to vector<16x6xi32>
    %88 = arith.subi %74, %87 : vector<16x6xi32>
    %89 = arith.select %76, %74, %88 : vector<16x6xi1>, vector<16x6xi32>
    %c0_i32_23 = arith.constant 0 : i32
    %90 = vector.broadcast %c0_i32_23 : i32 to vector<16x6xi32>
    %91 = arith.cmpi eq, %89, %90 : vector<16x6xi32>
    %cst_24 = arith.constant 1.000000e+00 : f32
    %92 = vector.broadcast %cst_24 : f32 to vector<16x6xf32>
    %c1_i32_25 = arith.constant 1 : i32
    %93 = vector.broadcast %c1_i32_25 : i32 to vector<16x6xi32>
    %94 = arith.cmpi eq, %89, %93 : vector<16x6xi32>
    %95 = arith.mulf %86, %86 : vector<16x6xf32>
    %96 = arith.select %94, %86, %95 : vector<16x6xi1>, vector<16x6xf32>
    %97 = arith.select %91, %92, %96 : vector<16x6xi1>, vector<16x6xf32>
    %98 = arith.mulf %81, %97 : vector<16x6xf32>
    %cst_26 = arith.constant dense<0.000000e+00> : vector<6xf32>
    %99 = vector.multi_reduction <add>, %98, %cst_26 [0] : vector<16x6xf32> to vector<6xf32>
    %100 = vector.shape_cast %99 : vector<6xf32> to vector<1x6xf32>
    %101 = vector.extract_strided_slice %73 {offsets = [0, 0], sizes = [1, 1], strides = [1, 1]} : vector<1x6xf32> to vector<1x1xf32>
    %102 = vector.extract_strided_slice %73 {offsets = [0, 1], sizes = [1, 1], strides = [1, 1]} : vector<1x6xf32> to vector<1x1xf32>
    %103 = vector.extract_strided_slice %73 {offsets = [0, 2], sizes = [1, 1], strides = [1, 1]} : vector<1x6xf32> to vector<1x1xf32>
    %104 = vector.extract_strided_slice %73 {offsets = [0, 3], sizes = [1, 1], strides = [1, 1]} : vector<1x6xf32> to vector<1x1xf32>
    %105 = vector.extract_strided_slice %73 {offsets = [0, 4], sizes = [1, 1], strides = [1, 1]} : vector<1x6xf32> to vector<1x1xf32>
    %106 = vector.extract_strided_slice %73 {offsets = [0, 5], sizes = [1, 1], strides = [1, 1]} : vector<1x6xf32> to vector<1x1xf32>
    %107 = vector.extract_strided_slice %100 {offsets = [0, 0], sizes = [1, 1], strides = [1, 1]} : vector<1x6xf32> to vector<1x1xf32>
    %108 = vector.extract_strided_slice %100 {offsets = [0, 1], sizes = [1, 1], strides = [1, 1]} : vector<1x6xf32> to vector<1x1xf32>
    %109 = vector.extract_strided_slice %100 {offsets = [0, 2], sizes = [1, 1], strides = [1, 1]} : vector<1x6xf32> to vector<1x1xf32>
    %110 = vector.extract_strided_slice %100 {offsets = [0, 3], sizes = [1, 1], strides = [1, 1]} : vector<1x6xf32> to vector<1x1xf32>
    %111 = vector.extract_strided_slice %100 {offsets = [0, 4], sizes = [1, 1], strides = [1, 1]} : vector<1x6xf32> to vector<1x1xf32>
    %112 = vector.extract_strided_slice %100 {offsets = [0, 5], sizes = [1, 1], strides = [1, 1]} : vector<1x6xf32> to vector<1x1xf32>
    %113 = arith.mulf %101, %109 : vector<1x1xf32>
    %cst_27 = arith.constant 2.000000e+00 : f32
    %114 = vector.broadcast %cst_27 : f32 to vector<1x1xf32>
    %115 = arith.mulf %114, %102 : vector<1x1xf32>
    %116 = arith.mulf %115, %108 : vector<1x1xf32>
    %117 = arith.subf %113, %116 : vector<1x1xf32>
    %118 = arith.mulf %107, %103 : vector<1x1xf32>
    %119 = arith.addf %117, %118 : vector<1x1xf32>
    %120 = arith.mulf %101, %107 : vector<1x1xf32>
    %cst_28 = arith.constant 0.000000e+00 : f32
    %121 = vector.broadcast %cst_28 : f32 to vector<1x1xf32>
    %122 = arith.cmpf ogt, %101, %121 : vector<1x1xf32>
    %cst_29 = arith.constant 0.000000e+00 : f32
    %123 = vector.broadcast %cst_29 : f32 to vector<1x1xf32>
    %124 = arith.cmpf ogt, %107, %123 : vector<1x1xf32>
    %125 = arith.andi %122, %124 : vector<1x1xi1>
    %cst_30 = arith.constant 1.000000e+00 : f32
    %126 = vector.broadcast %cst_30 : f32 to vector<1x1xf32>
    %127 = arith.maximumf %120, %126 : vector<1x1xf32>
    %128 = arith.divf %119, %127 : vector<1x1xf32>
    %cst_31 = arith.constant 0.000000e+00 : f32
    %129 = vector.broadcast %cst_31 : f32 to vector<1x1xf32>
    %130 = arith.select %125, %128, %129 : vector<1x1xi1>, vector<1x1xf32>
    %131 = arith.mulf %104, %112 : vector<1x1xf32>
    %cst_32 = arith.constant 2.000000e+00 : f32
    %132 = vector.broadcast %cst_32 : f32 to vector<1x1xf32>
    %133 = arith.mulf %132, %105 : vector<1x1xf32>
    %134 = arith.mulf %133, %111 : vector<1x1xf32>
    %135 = arith.subf %131, %134 : vector<1x1xf32>
    %136 = arith.mulf %110, %106 : vector<1x1xf32>
    %137 = arith.addf %135, %136 : vector<1x1xf32>
    %138 = arith.mulf %104, %110 : vector<1x1xf32>
    %cst_33 = arith.constant 0.000000e+00 : f32
    %139 = vector.broadcast %cst_33 : f32 to vector<1x1xf32>
    %140 = arith.cmpf ogt, %104, %139 : vector<1x1xf32>
    %cst_34 = arith.constant 0.000000e+00 : f32
    %141 = vector.broadcast %cst_34 : f32 to vector<1x1xf32>
    %142 = arith.cmpf ogt, %110, %141 : vector<1x1xf32>
    %143 = arith.andi %140, %142 : vector<1x1xi1>
    %cst_35 = arith.constant 1.000000e+00 : f32
    %144 = vector.broadcast %cst_35 : f32 to vector<1x1xf32>
    %145 = arith.maximumf %138, %144 : vector<1x1xf32>
    %146 = arith.divf %137, %145 : vector<1x1xf32>
    %cst_36 = arith.constant 0.000000e+00 : f32
    %147 = vector.broadcast %cst_36 : f32 to vector<1x1xf32>
    %148 = arith.select %143, %146, %147 : vector<1x1xi1>, vector<1x1xf32>
    %149 = arith.addf %130, %148 : vector<1x1xf32>
    %c0_37 = arith.constant 0 : index
    %c0_38 = arith.constant 0 : index
    %150 = vector.load %arg5[%c0_37, %c0_38] : memref<1x1xf32, #tpu.memory_space<vmem>>, vector<1x1xf32>
    tpu.vector_store %arg5[%c0_37, %c0_38], %149 {strides = array<i32>} : memref<1x1xf32, #tpu.memory_space<vmem>>, vector<1x1xf32>,
    %151 = vector.extract_strided_slice %20 {offsets = [8, 0], sizes = [8, 1], strides = [1, 1]} : vector<16x1xf32> to vector<8x1xf32>
    %c0_39 = arith.constant 0 : index
    %c0_40 = arith.constant 0 : index
    %152 = vector.load %arg6[%c0_39, %c0_40] : memref<16x1xf32, #tpu.memory_space<vmem>>, vector<8x1xf32>
    tpu.vector_store %arg6[%c0_39, %c0_40], %151 {strides = array<i32>} : memref<16x1xf32, #tpu.memory_space<vmem>>, vector<8x1xf32>,
    %153 = vector.extract_strided_slice %21 {offsets = [8, 0], sizes = [8, 1], strides = [1, 1]} : vector<16x1xf32> to vector<8x1xf32>
    %c0_41 = arith.constant 0 : index
    %c0_42 = arith.constant 0 : index
    %154 = vector.load %arg7[%c0_41, %c0_42] : memref<16x1xf32, #tpu.memory_space<vmem>>, vector<8x1xf32>
    tpu.vector_store %arg7[%c0_41, %c0_42], %153 {strides = array<i32>} : memref<16x1xf32, #tpu.memory_space<vmem>>, vector<8x1xf32>,
    %c8 = arith.constant 8 : index
    %c0_43 = arith.constant 0 : index
    %155 = vector.load %arg6[%c8, %c0_43] : memref<16x1xf32, #tpu.memory_space<vmem>>, vector<8x1xf32>
    tpu.vector_store %arg6[%c8, %c0_43], %10 {strides = array<i32>} : memref<16x1xf32, #tpu.memory_space<vmem>>, vector<8x1xf32>,
    %c8_44 = arith.constant 8 : index
    %c0_45 = arith.constant 0 : index
    %156 = vector.load %arg7[%c8_44, %c0_45] : memref<16x1xf32, #tpu.memory_space<vmem>>, vector<8x1xf32>
    tpu.vector_store %arg7[%c8_44, %c0_45], %10 {strides = array<i32>} : memref<16x1xf32, #tpu.memory_space<vmem>>, vector<8x1xf32>,
    return
  }
}

</mosaic_0001>

<llo_original>
// kernel: rocstar_step.1
$region0: #{rocstar_step.1}
  #allocation0 [shape = 'u32[]', space=smem, size = 0x4, offset = 0x4, fixed_abs, tag = 'smem constant byte address 0x4 - core index']
  #allocation1 [shape = 'u32[72,128]{1,0:T(1,128)}', space=vmem, size = 0x9000, scoped, tag = 'internal scratch']
  #allocation2 [shape = 'f32[1]{0:T(128)S(6)}', space=smem, size = 0x200, scoped, tag = 'scoped memory for rocstar_step.1']
  %s0 = inlined_call_operand.vmem [shape: f32[8,2], index: 0, kind: input, shape index: {}]
  %s1 = inlined_call_operand.vmem [shape: f32[8,1], index: 1, kind: input, shape index: {}]
  %s2 = inlined_call_operand.vmem [shape: f32[16,1], index: 2, kind: input, shape index: {}, may-alias: {2,6}]
  %s3 = inlined_call_operand.vmem [shape: f32[16,1], index: 3, kind: input, shape index: {}, may-alias: {3,7}]
  %s4 = inlined_call_operand.<no memory space> [shape: f32[1], index: 4, kind: input, shape index: {}]
  %s5 = inlined_call_operand.hbm [shape: f32[1,1], index: 5, kind: output, shape index: {0}]
  %s6 = inlined_call_operand.vmem [shape: f32[16,1], index: 6, kind: output, shape index: {1}, may-alias: {2,6}]
  %s7 = inlined_call_operand.vmem [shape: f32[16,1], index: 7, kind: output, shape index: {2}, may-alias: {3,7}]
  %8 = xla_tuple %s5, %s6, %s7
  %s9 = sld [smem:[#allocation0]]
  $region46: #{rocstar_step.1} parent=0
    _
  %s11 = ssub.s32 1, %s9
  %s12 = scalar_select 0, %s11, %s9
  %13 = sst [smem:[#allocation2]] %s4
  $region1: #{rocstar_step.1} parent=0
    #allocation3 [shape = 'u8[512]{0}', space=vmem, size = 0x400, scoped, tag = 'output window, operand 0, single buffered']
    #allocation4 [shape = 's32[1]{0}', space=sflag, size = 0x4, scoped, tag = 'scoped memory for rocstar_step.1']
    %14 = vsyncpa [#allocation4], 0
    // Predicated region
    $region2: #{rocstar_step.1} parent=1 // pred_check
      _
    $region3: #{rocstar_step.1} parent=1 // pred_check_branch
      %16 = sbr.rel (0) target = $region5
    $region4: #{rocstar_step.1} parent=1 // pred_region
      _
    $region5: #{rocstar_step.1} parent=1 // pred_fallthru
      _
    // Predicated region
    $region6: #{rocstar_step.1} parent=1 // pred_check
      _
    $region7: #{rocstar_step.1} parent=1 // pred_check_branch
      %18 = sbr.rel (0) target = $region9
    $region8: #{rocstar_step.1} parent=1 // pred_region
      _
    $region9: #{rocstar_step.1} parent=1 // pred_fallthru
      _
    // Predicated region
    $region10: #{rocstar_step.1} parent=1 // pred_check
      _
    $region11: #{rocstar_step.1} parent=1 // pred_check_branch
      %20 = sbr.rel (0) target = $region13
    $region12: #{rocstar_step.1} parent=1 // pred_region
      _
    $region13: #{rocstar_step.1} parent=1 // pred_fallthru
      _
    // Predicated region
    $region14: #{rocstar_step.1} parent=1 // pred_check
      _
    $region15: #{rocstar_step.1} parent=1 // pred_check_branch
      %22 = sbr.rel (0) target = $region17
    $region16: #{rocstar_step.1} parent=1 // pred_region
      _
    $region17: #{rocstar_step.1} parent=1 // pred_fallthru
      _
    // Predicated region
    $region18: #{rocstar_step.1} parent=1 // pred_check
      _
    $region19: #{rocstar_step.1} parent=1 // pred_check_branch
      %24 = sbr.rel (0) target = $region21
    $region20: #{rocstar_step.1} parent=1 // pred_region
      _
    $region21: #{rocstar_step.1} parent=1 // pred_fallthru
      _
    %s25 = sld [smem:[#allocation2]]
    %v26 = vld [vmem:[%s0] sm:$0xff]
    %28 = vrot.lane.b32.xlu0 %v26, 1
    %v29 = vpop.permute.xlu0 %28
    %v31 = vsub.f32 %v26, %v29
    %v32 = vsub.f32 0.0, %v31
    %v33 = vmul.f32 %v32, 1.442695
    %v34 = vpow.pop %v33
    %v35 = vadd.f32 %v34, 1.0
    %v36 = vrcp.pop %v35
    %v37 = vld [vmem:[%s1] sm:$0xff]
    %vm38 = vcmp.gt.f32.partialorder %v37, 0.0
    %v39 = vsel %vm38, 1, 0
    %v40 = vcvt.s32.f32 %v39
    %vm41 = vcmp.lt.f32.partialorder %v37, 1.0
    %v42 = vsel %vm41, 1, 0
    %v43 = vcvt.s32.f32 %v42
    %v44 = vld [vmem:[%s2] sm:$0xff]
    %v45 = vld [vmem:[%s2 + $0x8] sm:$0xff]
    %v46 = vld [vmem:[%s3] sm:$0xff]
    %v47 = vld [vmem:[%s3 + $0x8] sm:$0xff]
    %v48 = vlaneseq
    %v49 = vshrl.u32 %v48, 7
    %v50 = vadd.s32 %v49, 8
    %vm51 = vcmp.ge.s32.totalorder %v49, 0
    %vm52 = vcmp.ge.s32.totalorder %v50, 0
    %vm53 = vcmp.gt.f32.partialorder %v46, 0.0
    %vm54 = vcmp.gt.f32.partialorder %v47, 0.0
    %vm55 = vmand %vm51, %vm53
    %vm56 = vmand %vm52, %vm54
    %v57 = vsel %vm55, 1, 0
    %v58 = vsel %vm56, 1, 0
    %v59 = vcvt.s32.f32 %v57
    %v60 = vcvt.s32.f32 %v58
    %vm61 = vcmp.lt.f32.partialorder %v46, 1.0
    %vm62 = vcmp.lt.f32.partialorder %v47, 1.0
    %vm63 = vmand %vm51, %vm61
    %vm64 = vmand %vm52, %vm62
    %v65 = vsel %vm63, 1, 0
    %v66 = vsel %vm64, 1, 0
    %v67 = vcvt.s32.f32 %v65
    %v68 = vcvt.s32.f32 %v66
    %v69 = vsub.f32 %v36, 0.5
    %v70 = vstv %s25
    %v71 = vadd.f32 %v36, %v70
    %v72 = vsub.f32 %v71, 0.5
    %v73 = vsub.f32 %v44, 0.5
    %v74 = vsub.f32 %v45, 0.5
    %v75 = vadd.f32 %v44, %v70
    %v76 = vadd.f32 %v45, %v70
    %v77 = vsub.f32 %v75, 0.5
    %v78 = vsub.f32 %v76, 0.5
    %v79 = vlaneseq
    %v80 = vand.u32 %v79, 127
    %vm81 = vcmp.lt.s32.totalorder %v80, 3
    %83 = vset.pattern.permute.xlu0 0
    %84 = vperm.xlu0 %83, %v40
    %v85 = vpop.permute.xlu0 %84
    %88 = vset.pattern.permute.xlu0 0
    %89 = vperm.xlu0 %88, %v43
    %v90 = vpop.permute.xlu0 %89
    %v92 = vsel %vm81, %v85, %v90
    %94 = vset.pattern.permute.xlu0 1
    %95 = vperm.xlu0 %94, %v69
    %v96 = vpop.permute.xlu0 %95
    %99 = vset.pattern.permute.xlu0 1
    %100 = vperm.xlu0 %99, %v72
    %v101 = vpop.permute.xlu0 %100
    %v103 = vsel %vm81, %v96, %v101
    %v104 = vsub.s32 %v80, 3
    %v105 = vsel %vm81, %v80, %v104
    %vm106 = vcmp.eq.s32.totalorder %v105, 0
    %vm107 = vcmp.eq.s32.totalorder %v105, 1
    %v108 = vmul.f32 %v103, %v103
    %v109 = vsel %vm107, %v103, %v108
    %v110 = vsel %vm106, 1.0, %v109
    %v111 = vmul.f32 %v92, %v110
    %vm112 = vcmask 48128
    %v113 = vsel %vm112, %v111, 0.0
    %v114 = vrot.slane %v113, 4
    %v115 = vadd.f32 %v113, %v114
    %v116 = vrot.slane %v115, 2
    %v117 = vadd.f32 %v115, %v116
    %v118 = vrot.slane %v117, 1
    %v119 = vadd.f32 %v117, %v118
    %121 = vset.pattern.permute.xlu0 0
    %122 = vperm.xlu0 %121, %v67
    %v123 = vpop.permute.xlu0 %122
    %126 = vset.pattern.permute.xlu0 0
    %127 = vperm.xlu0 %126, %v68
    %v128 = vpop.permute.xlu0 %127
    %131 = vset.pattern.permute.xlu0 0
    %132 = vperm.xlu0 %131, %v59
    %v133 = vpop.permute.xlu0 %132
    %136 = vset.pattern.permute.xlu0 0
    %137 = vperm.xlu0 %136, %v60
    %v138 = vpop.permute.xlu0 %137
    %v140 = vsel %vm81, %v123, %v133
    %v141 = vsel %vm81, %v128, %v138
    %143 = vset.pattern.permute.xlu0 0
    %144 = vperm.xlu0 %143, %v77
    %v145 = vpop.permute.xlu0 %144
    %148 = vset.pattern.permute.xlu0 0
    %149 = vperm.xlu0 %148, %v78
    %v150 = vpop.permute.xlu0 %149
    %153 = vset.pattern.permute.xlu0 0
    %154 = vperm.xlu0 %153, %v73
    %v155 = vpop.permute.xlu0 %154
    %158 = vset.pattern.permute.xlu0 0
    %159 = vperm.xlu0 %158, %v74
    %v160 = vpop.permute.xlu0 %159
    %v162 = vsel %vm81, %v145, %v155
    %v163 = vsel %vm81, %v150, %v160
    %v164 = vmul.f32 %v162, %v162
    %v165 = vmul.f32 %v163, %v163
    %v166 = vsel %vm107, %v162, %v164
    %v167 = vsel %vm107, %v163, %v165
    %v168 = vsel %vm106, 1.0, %v166
    %v169 = vsel %vm106, 1.0, %v167
    %v170 = vmul.f32 %v140, %v168
    %v171 = vmul.f32 %v141, %v169
    %v172 = vsel %vm112, %v170, 0.0
    %v173 = vsel %vm112, %v171, 0.0
    %v174 = vadd.f32 %v172, %v173
    %v175 = vrot.slane %v174, 4
    %v176 = vadd.f32 %v174, %v175
    %v177 = vrot.slane %v176, 2
    %v178 = vadd.f32 %v176, %v177
    %v179 = vrot.slane %v178, 1
    %v180 = vadd.f32 %v178, %v179
    %182 = vrot.lane.b32.xlu0 %v180, 126
    %v183 = vpop.permute.xlu0 %182
    %v185 = vmul.f32 %v119, %v183
    %v186 = vmul.f32 %v119, 2.0
    %v187 = vmul.f32 %v186, %v180
    %189 = vrot.lane.b32.xlu0 %v187, 127
    %v190 = vpop.permute.xlu0 %189
    %v192 = vsub.f32 %v185, %v190
    %194 = vrot.lane.b32.xlu0 %v119, 126
    %v195 = vpop.permute.xlu0 %194
    %v197 = vmul.f32 %v180, %v195
    %v198 = vadd.f32 %v192, %v197
    %v199 = vmul.f32 %v119, %v180
    %vm200 = vcmp.gt.f32.partialorder %v119, 0.0
    %vm201 = vcmp.gt.f32.partialorder %v180, 0.0
    %vm202 = vmand %vm200, %vm201
    %v203 = vmax.f32 %v199, 1.0
    %v204 = vrcp.pop %v203
    %v205 = vmul.f32 %v203, %v204
    %v206 = vsub.f32 1.0, %v205
    %v207 = vmul.f32 %v204, %v206
    %v208 = vadd.f32 %v204, %v207
    %vm209 = vweird.f32 %v203
    %vm210 = vweird.f32 %v204
    %vm211 = vmor %vm209, %vm210
    %v212 = vsel %vm211, %v204, %v208
    %v213 = vand.u32 2147483647, %v203
    %vm214 = vcmp.eq.f32.partialorder %v213, 8.507059e+37
    %v215 = vand.u32 %v203, 2147483648
    %v216 = vor.u32 1.1754944e-38, %v215
    %v217 = vsel %vm214, %v216, %v212
    %v218 = vmul.f32 %v198, %v217
    %v219 = vsel %vm202, %v218, 0.0
    %221 = vrot.lane.b32.xlu0 %v219, 125
    %v222 = vpop.permute.xlu0 %221
    %v224 = vadd.f32 %v219, %v222
    %vm225 = vcmask 0
    %226 = vst.msk [vmem:[#allocation3] sm:$0x1] %vm225, %v224
    %vm227 = vcmask 7168
    %228 = vst.msk [vmem:[%s6] sm:$0xff] %vm227, %v45
    %229 = vst.msk [vmem:[%s7] sm:$0xff] %vm227, %v47
    %231 = vrot.lane.b32.xlu0 %v36, 127
    %v232 = vpop.permute.xlu0 %231
    %234 = vst.msk [vmem:[%s6 + $0x8] sm:$0xff] %vm227, %v232
    %235 = vst.msk [vmem:[%s7 + $0x8] sm:$0xff] %vm227, %v232
    // Predicated region
    $region22: #{rocstar_step.1} parent=1 // pred_check
      _
    $region23: #{rocstar_step.1} parent=1 // pred_check_branch
      %237 = sbr.rel (0) target = $region25
    $region24: #{rocstar_step.1} parent=1 // pred_region
      %239 = vsyncadd [#allocation4], 0
      %s241 = sshll.u32 [#allocation3], 4
      %s242 = int_to_ptr.vmem [resolvable:$true] %s241
      %s243 = sshll.u32 %s5, 4
      %s244 = int_to_ptr.hbm [resolvable:$true] %s243
      %246 = dma.vmem_to_hbm [thread:$0]  %s242, 16, %s244, [#allocation4]
    $region25: #{rocstar_step.1} parent=1 // pred_fallthru
      _
    // Predicated region
    $region26: #{rocstar_step.1} parent=1 // pred_check
      _
    $region27: #{rocstar_step.1} parent=1 // pred_check_branch
      %248 = sbr.rel (0) target = $region29
    $region28: #{rocstar_step.1} parent=1 // pred_region
      _
    $region29: #{rocstar_step.1} parent=1 // pred_fallthru
      _
    // Predicated region
    $region30: #{rocstar_step.1} parent=1 // pred_check
      _
    $region31: #{rocstar_step.1} parent=1 // pred_check_branch
      %250 = sbr.rel (0) target = $region33
    $region32: #{rocstar_step.1} parent=1 // pred_region
      _
    $region33: #{rocstar_step.1} parent=1 // pred_fallthru
      _
    // Predicated region
    $region34: #{rocstar_step.1} parent=1 // pred_check
      _
    $region35: #{rocstar_step.1} parent=1 // pred_check_branch
      %252 = sbr.rel (0) target = $region37
    $region36: #{rocstar_step.1} parent=1 // pred_region
      %254 = dma.done [#allocation4], 16
    $region37: #{rocstar_step.1} parent=1 // pred_fallthru
      _
    // Predicated region
    $region38: #{rocstar_step.1} parent=1 // pred_check
      _
    $region39: #{rocstar_step.1} parent=1 // pred_check_branch
      %256 = sbr.rel (0) target = $region41
    $region40: #{rocstar_step.1} parent=1 // pred_region
      _
    $region41: #{rocstar_step.1} parent=1 // pred_fallthru
      _
    // Predicated region
    $region42: #{rocstar_step.1} parent=1 // pred_check
      _
    $region43: #{rocstar_step.1} parent=1 // pred_check_branch
      %258 = sbr.rel (0) target = $region45
    $region44: #{rocstar_step.1} parent=1 // pred_region
      _
    $region45: #{rocstar_step.1} parent=1 // pred_fallthru
      _
    %259 = vsyncpa [#allocation4], 1

</llo_original>
